<compile_context>
chip_gen: v6e
topology: v6e:2x2x1
jax: 0.10.0
libtpu: 0.0.40
codegen_flags: <defaults>
</compile_context>

<pallas_src>
import jax
import jax.numpy as jnp
from jax.experimental import pallas as pl
from jax.experimental.pallas import tpu as pltpu


def _numerical_embedding_kernel(x_ref, w_ref, b_ref, o_ref):
    # x_ref: (TB, F)   w_ref: (F, E_pad)   b_ref: (1, E_pad) f32   o_ref: (TB, E_pad)
    y = jnp.dot(x_ref[...], w_ref[...], preferred_element_type=jnp.float32)
    y = y + b_ref[...]                      # bias add in f32
    o_ref[...] = y.astype(o_ref.dtype)      # single final cast


def numerical_embedding(x, weight, bias, *, tile_b=None):
    """y = x @ weight.T + bias  (PyTorch nn.Linear semantics).

    x:      (B, F)
    weight: (E, F)
    bias:   (E,)
    return: (B, E)
    """
    B, F = x.shape
    E, F2 = weight.shape
    assert F == F2, "weight last dim must equal num_numerical"
    assert bias.shape == (E,)

    # ---- lane-dense output: pad E to a multiple of 128 (sliced off after the call) ----
    E_pad = max(128, ((E + 127) // 128) * 128)

    # ---- hoist the transpose + padding into XLA (done once, outside the grid loop) ----
    w_t = jnp.zeros((F, E_pad), dtype=weight.dtype).at[:, :E].set(weight.T)
    b_row = jnp.zeros((1, E_pad), dtype=jnp.float32).at[:, :E].set(bias.astype(jnp.float32))

    # ---- batch tiling: multiple of 8, capped so double-buffered tiles stay tiny in VMEM
    #      and the grid has many steps for pipelining / v7x megacore sharding ----
    if tile_b is None:
        tile_b = min(max(B, 8), 2048)
    tile_b = max(8, (tile_b // 8) * 8)      # enforce sublane (8) alignment
    tile_b = min(tile_b, 8192)              # VMEM-safe cap even on v7x (64 MiB/TC)

    B_pad = ((B + tile_b - 1) // tile_b) * tile_b
    if B_pad != B:
        x = jnp.pad(x, ((0, B_pad - B), (0, 0)))

    grid = (B_pad // tile_b,)

    # ---- advisory cost estimate: this op is HBM-bandwidth bound ----
    itemsize = jnp.dtype(x.dtype).itemsize
    cost = pl.CostEstimate(
        flops=2 * B_pad * F * E_pad,
        transcendentals=0,
        bytes_accessed=(
            itemsize * B_pad * F                      # read x
            + jnp.dtype(w_t.dtype).itemsize * F * E_pad   # read W^T
            + 4 * E_pad                               # read bias (f32)
            + itemsize * B_pad * E_pad                # write out
        ),
    )

    out = pl.pallas_call(
        _numerical_embedding_kernel,
        out_shape=jax.ShapeDtypeStruct((B_pad, E_pad), x.dtype),
        grid_spec=pltpu.PrefetchScalarGridSpec(
            num_scalar_prefetch=0,
            grid=grid,
            in_specs=[
                pl.BlockSpec((tile_b, F), lambda i: (i, 0)),     # x tile (pipelined)
                pl.BlockSpec((F, E_pad), lambda i: (0, 0)),      # pre-transposed weight (resident)
                pl.BlockSpec((1, E_pad), lambda i: (0, 0)),      # bias row (resident)
            ],
            out_specs=pl.BlockSpec((tile_b, E_pad), lambda i: (i, 0)),
        ),
        compiler_params=pltpu.CompilerParams(
            dimension_semantics=("parallel",),
            vmem_limit_bytes=64 * 1024 * 1024,
        ),
        cost_estimate=cost,
    )(x, w_t, b_row)

    # Strip batch / embedding padding.
    return out[:B, :E]


if __name__ == "__main__":
    # Small shapes consistent with the module's forward.
    batch = 8
    num_numerical = 16
    embedding_dim = 32

    key = jax.random.PRNGKey(0)
    kx, kw, kb = jax.random.split(key, 3)

    x = jax.random.normal(kx, (batch, num_numerical), dtype=jnp.float32)

    # Deterministic parameter init (Kaiming-uniform-like bounds, as nn.Linear).
    bound = 1.0 / jnp.sqrt(num_numerical)
    weight = jax.random.uniform(
        kw, (embedding_dim, num_numerical), minval=-bound, maxval=bound, dtype=jnp.float32
    )
    bias = jax.random.uniform(
        kb, (embedding_dim,), minval=-bound, maxval=bound, dtype=jnp.float32
    )

    y = numerical_embedding(x, weight, bias)
    y = jax.block_until_ready(y)

    # Reference check against plain JAX (same semantics as PyTorch Linear).
    y_ref = x @ weight.T + bias
    assert y.shape == (batch, embedding_dim)
    assert jnp.allclose(y, y_ref, atol=1e-5, rtol=1e-5)

    print("KERNEL_OK")
</pallas_src>

<mosaic_0001>
module attributes {stable_mosaic.version = 11 : i64} {
  func.func @_numerical_embedding_kernel(%arg0: i32, %arg1: memref<8x16xf32, #tpu.memory_space<vmem>>, %arg2: memref<16x128xf32, #tpu.memory_space<vmem>>, %arg3: memref<1x128xf32, #tpu.memory_space<vmem>>, %arg4: memref<8x128xf32, #tpu.memory_space<vmem>>) attributes {dimension_semantics = [#tpu.dimension_semantics<parallel>], iteration_bounds = array<i64: 1>, scalar_prefetch = 0 : i64, scratch_operands = 0 : i64, tpu.core_type = #tpu.core_type<tc>, window_params = [{transform_indices = @transform_0, window_bounds = array<i64: 8, 16>}, {pipeline_mode = #tpu.pipeline_mode<synchronous>, transform_indices = @transform_1, window_bounds = array<i64: 16, 128>}, {pipeline_mode = #tpu.pipeline_mode<synchronous>, transform_indices = @transform_2, window_bounds = array<i64: 1, 128>}, {transform_indices = @transform_3, window_bounds = array<i64: 8, 128>}]} {
    %c0 = arith.constant 0 : index
    %c0_0 = arith.constant 0 : index
    %0 = vector.load %arg1[%c0, %c0_0] : memref<8x16xf32, #tpu.memory_space<vmem>>, vector<8x16xf32>
    %c0_1 = arith.constant 0 : index
    %c0_2 = arith.constant 0 : index
    %1 = vector.load %arg2[%c0_1, %c0_2] : memref<16x128xf32, #tpu.memory_space<vmem>>, vector<16x128xf32>
    %cst = arith.constant dense<0.000000e+00> : vector<8x128xf32>
    %2 = tpu.matmul %0, %1, %cst {dimension_numbers = #tpu.dot_dimension_numbers<[1], [0], [0], [1], [0, 0, 1, 1], [], []>} : vector<8x16xf32>, vector<16x128xf32>, vector<8x128xf32> -> vector<8x128xf32>
    %c0_3 = arith.constant 0 : index
    %c0_4 = arith.constant 0 : index
    %3 = vector.load %arg3[%c0_3, %c0_4] : memref<1x128xf32, #tpu.memory_space<vmem>>, vector<1x128xf32>
    %4 = vector.broadcast %3 : vector<1x128xf32> to vector<8x128xf32>
    %5 = arith.addf %2, %4 : vector<8x128xf32>
    %c0_5 = arith.constant 0 : index
    %c0_6 = arith.constant 0 : index
    %6 = vector.load %arg4[%c0_5, %c0_6] : memref<8x128xf32, #tpu.memory_space<vmem>>, vector<8x128xf32>
    tpu.vector_store %arg4[%c0_5, %c0_6], %5 {strides = array<i32>} : memref<8x128xf32, #tpu.memory_space<vmem>>, vector<8x128xf32>,
    return
  }
  func.func @transform_0(%arg0: i32) -> (i32, i32) {
    %c0_i32 = arith.constant 0 : i32
    %c0_i32_0 = arith.constant 0 : i32
    return %arg0, %c0_i32 : i32, i32
  }
  func.func @transform_1(%arg0: i32) -> (i32, i32) {
    %c0_i32 = arith.constant 0 : i32
    %c0_i32_0 = arith.constant 0 : i32
    %c0_i32_1 = arith.constant 0 : i32
    return %c0_i32, %c0_i32_0 : i32, i32
  }
  func.func @transform_2(%arg0: i32) -> (i32, i32) {
    %c0_i32 = arith.constant 0 : i32
    %c0_i32_0 = arith.constant 0 : i32
    %c0_i32_1 = arith.constant 0 : i32
    return %c0_i32, %c0_i32_0 : i32, i32
  }
  func.func @transform_3(%arg0: i32) -> (i32, i32) {
    %c0_i32 = arith.constant 0 : i32
    %c0_i32_0 = arith.constant 0 : i32
    return %arg0, %c0_i32 : i32, i32
  }
}

</mosaic_0001>

<llo_original>
// kernel: tpu_custom_call.1
$region0: #{tpu_custom_call.1}
  #allocation0 [shape = 'u32[]', space=smem, size = 0x4, offset = 0x4, fixed_abs, tag = 'smem constant byte address 0x4 - core index']
  #allocation1 [shape = 'u32[144,128]{1,0:T(1,128)}', space=vmem, size = 0x12000, scoped, tag = 'internal scratch']
  %s0 = inlined_call_operand.hbm [shape: f32[8,16], index: 0, kind: input, shape index: {}]
  %s1 = inlined_call_operand.hbm [shape: f32[16,128], index: 1, kind: input, shape index: {}]
  %s2 = inlined_call_operand.vmem [shape: f32[1,128], index: 2, kind: input, shape index: {}]
  %s3 = inlined_call_operand.hbm [shape: f32[8,128], index: 3, kind: output, shape index: {}]
  %s4 = sld [smem:[#allocation0]]
  $region30: #{tpu_custom_call.1} parent=0
    _
  %s6 = ssub.s32 1, %s4
  %s7 = scalar_select 0, %s6, %s4
  $region1: #{tpu_custom_call.1} parent=0
    #allocation2 [shape = 'u8[4096]{0}', space=vmem, size = 0x1000, scoped, tag = 'input window, operand 0, single buffered']
    #allocation3 [shape = 's32[1]{0}', space=sflag, size = 0x4, scoped, tag = 'scoped memory for tpu_custom_call.1']
    #allocation4 [shape = 's32[1]{0}', space=sflag, size = 0x4, scoped, tag = 'scoped memory for tpu_custom_call.1']
    #allocation5 [shape = 'u8[8192]{0}', space=vmem, size = 0x2000, scoped, tag = 'input window, operand 1, single buffered']
    #allocation6 [shape = 's32[1]{0}', space=sflag, size = 0x4, scoped, tag = 'scoped memory for tpu_custom_call.1']
    #allocation7 [shape = 'u8[4096]{0}', space=vmem, size = 0x1000, scoped, tag = 'output window, operand 0, single buffered']
    %8 = vsyncpa [#allocation3], 0
    %9 = vsyncpa [#allocation6], 0
    %10 = vsyncpa [#allocation4], 0
    // Predicated region
    $region2: #{tpu_custom_call.1} parent=1 // pred_check
      _
    $region3: #{tpu_custom_call.1} parent=1 // pred_check_branch
      %12 = sbr.rel (0) target = $region5
    $region4: #{tpu_custom_call.1} parent=1 // pred_region
      %s14 = ssub.s32 128, 128
      %15 = vsyncadd [#allocation3], %s14
      %s17 = sshll.u32 [#allocation2], 4
      %s18 = int_to_ptr.vmem [resolvable:$true] %s17
      %20 = dma.hbm_to_vmem [thread:$0]  %s0, 128, %s18, [#allocation3]
    $region5: #{tpu_custom_call.1} parent=1 // pred_fallthru
      _
    // Predicated region
    $region6: #{tpu_custom_call.1} parent=1 // pred_check
      _
    $region7: #{tpu_custom_call.1} parent=1 // pred_check_branch
      %22 = sbr.rel (0) target = $region9
    $region8: #{tpu_custom_call.1} parent=1 // pred_region
      %s24 = ssub.s32 256, 256
      %25 = vsyncadd [#allocation6], %s24
      %s26 = sshll.u32 [#allocation5], 4
      %s27 = int_to_ptr.vmem [resolvable:$true] %s26
      %32 = dma.hbm_to_vmem [thread:$0]  %s1, 256, %s27, [#allocation6], 128, 128, 8
    $region9: #{tpu_custom_call.1} parent=1 // pred_fallthru
      _
    // Predicated region
    $region10: #{tpu_custom_call.1} parent=1 // pred_check
      _
    $region11: #{tpu_custom_call.1} parent=1 // pred_check_branch
      %34 = sbr.rel (0) target = $region13
    $region12: #{tpu_custom_call.1} parent=1 // pred_region
      _
    $region13: #{tpu_custom_call.1} parent=1 // pred_fallthru
      _
    // Predicated region
    $region14: #{tpu_custom_call.1} parent=1 // pred_check
      _
    $region15: #{tpu_custom_call.1} parent=1 // pred_check_branch
      %36 = sbr.rel (0) target = $region17
    $region16: #{tpu_custom_call.1} parent=1 // pred_region
      %37 = dma.done [#allocation3], 128
    $region17: #{tpu_custom_call.1} parent=1 // pred_fallthru
      _
    // Predicated region
    $region18: #{tpu_custom_call.1} parent=1 // pred_check
      _
    $region19: #{tpu_custom_call.1} parent=1 // pred_check_branch
      %39 = sbr.rel (0) target = $region21
    $region20: #{tpu_custom_call.1} parent=1 // pred_region
      %40 = dma.done [#allocation6], 256
    $region21: #{tpu_custom_call.1} parent=1 // pred_fallthru
      _
    %v41 = vld [vmem:[#allocation2] sm:$0xff]
    %v42 = vld [vmem:[#allocation5] sm:$0xff]
    %v43 = vld [vmem:[#allocation5 + $0x8] sm:$0xff]
    %v44 = vld [vmem:[%s2] sm:$0x1]
    %v46 = vlaneseq
    %v47 = vshrl.u32 %v46, 7
    %v48 = vsub.s32 0, %v47
    %v49 = vrot.slane %v44, %v48
    %vm51 = vcmask 130048
    %v53 = vsel %vm51, %v41, 0
    %55 = vmatprep.subr.mxu0 0.0
    %56 = vmatpush1.msra.mxu0 0.0
    %57 = vmatprep.subr.mxu0 0.0
    %58 = vmatpush1.msra.mxu0 0.0
    %59 = vmatprep.subr.mxu0 0.0
    %60 = vmatpush1.msra.mxu0 0.0
    %61 = vmatprep.subr.mxu0 0.0
    %62 = vmatpush1.msra.mxu0 0.0
    %63 = vmatprep.subr.mxu0 0.0
    %64 = vmatpush1.msra.mxu0 0.0
    %65 = vmatprep.subr.mxu0 0.0
    %66 = vmatpush1.msra.mxu0 0.0
    %67 = vmatprep.subr.mxu0 0.0
    %68 = vmatpush1.msra.mxu0 0.0
    %69 = vmatprep.subr.mxu0 0.0
    %70 = vmatpush1.msra.mxu0 0.0
    %71 = vmatprep.subr.mxu0 0.0
    %72 = vmatpush1.msra.mxu0 0.0
    %73 = vmatprep.subr.mxu0 0.0
    %74 = vmatpush1.msra.mxu0 0.0
    %75 = vmatprep.subr.mxu0 0.0
    %76 = vmatpush1.msra.mxu0 0.0
    %77 = vmatprep.subr.mxu0 0.0
    %78 = vmatpush1.msra.mxu0 0.0
    %79 = vmatprep.subr.mxu0 0.0
    %80 = vmatpush1.msra.mxu0 0.0
    %81 = vmatprep.subr.mxu0 0.0
    %82 = vmatpush1.msra.mxu0 0.0
    %83 = vmatprep.subr.mxu0 0.0
    %84 = vmatpush1.msra.mxu0 %v43
    %85 = vmatprep.subr.mxu0 0.0
    %86 = vmatpush1.msra.mxu0 %v42
    %87 = vmatprep.subr.mxu0 0.0
    %88 = vmatpush2.msra.mxu0 0.0
    %89 = vmatprep.subr.mxu0 0.0
    %90 = vmatpush2.msra.mxu0 0.0
    %91 = vmatprep.subr.mxu0 0.0
    %92 = vmatpush2.msra.mxu0 0.0
    %93 = vmatprep.subr.mxu0 0.0
    %94 = vmatpush2.msra.mxu0 0.0
    %95 = vmatprep.subr.mxu0 0.0
    %96 = vmatpush2.msra.mxu0 0.0
    %97 = vmatprep.subr.mxu0 0.0
    %98 = vmatpush2.msra.mxu0 0.0
    %99 = vmatprep.subr.mxu0 0.0
    %100 = vmatpush2.msra.mxu0 0.0
    %101 = vmatprep.subr.mxu0 0.0
    %102 = vmatpush2.msra.mxu0 0.0
    %103 = vmatprep.subr.mxu0 0.0
    %104 = vmatpush2.msra.mxu0 0.0
    %105 = vmatprep.subr.mxu0 0.0
    %106 = vmatpush2.msra.mxu0 0.0
    %107 = vmatprep.subr.mxu0 0.0
    %108 = vmatpush2.msra.mxu0 0.0
    %109 = vmatprep.subr.mxu0 0.0
    %110 = vmatpush2.msra.mxu0 0.0
    %111 = vmatprep.subr.mxu0 0.0
    %112 = vmatpush2.msra.mxu0 0.0
    %113 = vmatprep.subr.mxu0 0.0
    %114 = vmatpush2.msra.mxu0 0.0
    %115 = vmatprep.subr.mxu0 0.0
    %116 = vmatpush2.msra.mxu0 0.0
    %117 = vmatprep.subr.mxu0 0.0
    %118 = vmatpush2.msra.mxu0 0.0
    %119 = vmatprep.mubr.f32.mxu0 0.0
    %120 = vmatmul.mubr.f32.gmra.mxu0 %v53
    %v121 = vpop.f32.mrf.mxu0
    %v122 = vadd.f32 %v49, %v121
    %v123 = vpop.f32.mrf.mxu0
    %124 = vdwg.mxu0
    %125 = vst [vmem:[#allocation7] sm:$0xff] %v122
    // Predicated region
    $region22: #{tpu_custom_call.1} parent=1 // pred_check
      _
    $region23: #{tpu_custom_call.1} parent=1 // pred_check_branch
      %127 = sbr.rel (0) target = $region25
    $region24: #{tpu_custom_call.1} parent=1 // pred_region
      %s129 = ssub.s32 128, 128
      %130 = vsyncadd [#allocation4], %s129
      %s132 = sshll.u32 [#allocation7], 4
      %s133 = int_to_ptr.vmem [resolvable:$true] %s132
      %135 = dma.vmem_to_hbm [thread:$0]  %s133, 128, %s3, [#allocation4]
    $region25: #{tpu_custom_call.1} parent=1 // pred_fallthru
      _
    // Predicated region
    $region26: #{tpu_custom_call.1} parent=1 // pred_check
      _
    $region27: #{tpu_custom_call.1} parent=1 // pred_check_branch
      %137 = sbr.rel (0) target = $region29
    $region28: #{tpu_custom_call.1} parent=1 // pred_region
      %138 = dma.done [#allocation4], 128
    $region29: #{tpu_custom_call.1} parent=1 // pred_fallthru
      _
    %139 = vsyncpa [#allocation3], 1
    %140 = vsyncpa [#allocation6], 1
    %141 = vsyncpa [#allocation4], 1

</llo_original>
